<compile_context>
chip_gen: v7x
topology: tpu7x:2x2x1
jax: 0.10.0
libtpu: 0.0.40
codegen_flags: <defaults>
</compile_context>

<pallas_src>
import jax
import jax.numpy as jnp
from jax.experimental import pallas as pl
from jax.experimental.pallas import tpu as pltpu

# ---- model constants (HARMONY_TYPE_RQ, small synthetic sizes) ---------------
NUM_PC = 12            # pitch classes
NUM_QUALITY = 4        # chord qualities (small synthetic value)
NUM_HARMONIES = NUM_PC * NUM_QUALITY
C_IN = 2 * NUM_PC      # pc_act ++ bass_pc
HID = 32               # note embedding size
D0 = NUM_PC            # NADE component 0: root pc
D1 = NUM_QUALITY       # NADE component 1: quality
MAX_TILE_T = 512       # frames per grid step (lane axis)


# ---------------------------- Pallas kernel ----------------------------------
def _make_kernel(T, tile_t):
    def kernel(pc_ref, bass_ref, gt_ref,
               wpc_ref, wbass_ref, be_ref,
               w0_ref, b0_ref, u0_ref,
               w1_ref, b1_ref,
               loss_ref):
        # streamed activations: bf16 in HBM (binary-valued -> exact), f32 math
        x_pc = pc_ref[...].astype(jnp.float32)          # (NUM_PC, tile_t)
        x_bass = bass_ref[...].astype(jnp.float32)      # (NUM_PC, tile_t)

        # --- note encoder (active embedding), time-on-lanes: emb^T = We^T @ x ---
        emb = (jnp.dot(wpc_ref[...], x_pc, preferred_element_type=jnp.float32)
               + jnp.dot(wbass_ref[...], x_bass, preferred_element_type=jnp.float32)
               + be_ref[...])
        emb = jnp.maximum(emb, 0.0)                     # (HID, tile_t)
        # TODO(synk): NoteEncoder's inactive_note_embedding path is not computed;
        # it does not contribute to the loss returned by Note2HarmonyNADE.forward.

        # ground truth arrives as int32 class indices; one-hots built in-kernel
        gt = gt_ref[...]                                # (2, tile_t) int32
        g0 = gt[0:1, :]                                 # (1, tile_t)
        g1 = gt[1:2, :]
        oh0 = (jax.lax.broadcasted_iota(jnp.int32, (D0, tile_t), 0) == g0).astype(jnp.float32)
        oh1 = (jax.lax.broadcasted_iota(jnp.int32, (D1, tile_t), 0) == g1).astype(jnp.float32)

        # --- NADE component 0: root pc (12-way CE) ---
        logits0 = jnp.dot(w0_ref[...], emb, preferred_element_type=jnp.float32) + b0_ref[...]
        m0 = jnp.max(logits0, axis=0, keepdims=True)
        lse0 = m0 + jnp.log(jnp.sum(jnp.exp(logits0 - m0), axis=0, keepdims=True))
        tgt0 = jnp.sum(oh0 * logits0, axis=0, keepdims=True)

        # --- NADE component 1: quality (4-way CE), teacher-forced on gt comp. 0 ---
        ctx = jnp.maximum(
            emb + jnp.dot(u0_ref[...], oh0, preferred_element_type=jnp.float32), 0.0)
        logits1 = jnp.dot(w1_ref[...], ctx, preferred_element_type=jnp.float32) + b1_ref[...]
        m1 = jnp.max(logits1, axis=0, keepdims=True)
        lse1 = m1 + jnp.log(jnp.sum(jnp.exp(logits1 - m1), axis=0, keepdims=True))
        tgt1 = jnp.sum(oh1 * logits1, axis=0, keepdims=True)

        ce = (lse0 - tgt0) + (lse1 - tgt1)              # (1, tile_t) per-frame loss

        # mask frames past T (tail of the last time tile from the cdiv grid)
        col = pl.program_id(1) * tile_t + jax.lax.broadcasted_iota(jnp.int32, (1, tile_t), 1)
        ce = jnp.where(col < T, ce, 0.0)

        # per-(batch, time-tile) partial sum; final reduction + /N happens in JAX
        loss_ref[...] = jnp.sum(ce, axis=1, keepdims=True)       # (1, 1)
    return kernel


def note2harmony_nade_loss(pc_act, bass_pc, gt0_idx, gt1_idx, params):
    """pc_act, bass_pc: (B, NUM_PC, T) float (torch NCW layout, kept native).
    gt0_idx, gt1_idx: (B, T) int ground-truth harmony component indices."""
    B, _, T = pc_act.shape
    N = B * T
    tile_t = T if T <= MAX_TILE_T else MAX_TILE_T
    n_tb = pl.cdiv(T, tile_t)

    # streams: bf16 activations (binary -> exact), fused int32 target indices
    pc_b = pc_act.astype(jnp.bfloat16)
    bass_b = bass_pc.astype(jnp.bfloat16)
    gt_idx = jnp.stack([gt0_idx, gt1_idx], axis=1).astype(jnp.int32)   # (B, 2, T)

    # tiny transposed weight views (time-on-lanes math); f32, VMEM-resident
    wpc = jnp.transpose(params["We"][:NUM_PC, :])     # (HID, NUM_PC)
    wbass = jnp.transpose(params["We"][NUM_PC:, :])   # (HID, NUM_PC)
    beT = jnp.transpose(params["be"])                 # (HID, 1)
    w0T = jnp.transpose(params["W0"])                 # (D0, HID)
    b0T = jnp.transpose(params["b0"])                 # (D0, 1)
    u0T = jnp.transpose(params["U0"])                 # (HID, D0)
    w1T = jnp.transpose(params["W1"])                 # (D1, HID)
    b1T = jnp.transpose(params["b1"])                 # (D1, 1)

    stream = lambda c: pl.BlockSpec((None, c, tile_t), lambda b, t: (b, 0, t))
    resident = lambda shape: pl.BlockSpec(shape, lambda b, t: (0, 0))

    partials = pl.pallas_call(
        _make_kernel(T, tile_t),
        out_shape=jax.ShapeDtypeStruct((B, n_tb, 1, 1), jnp.float32),
        grid_spec=pltpu.PrefetchScalarGridSpec(
            num_scalar_prefetch=0,
            grid=(B, n_tb),
            in_specs=[
                stream(NUM_PC),            # pc_act tile     (NUM_PC, tile_t) bf16
                stream(NUM_PC),            # bass_pc tile    (NUM_PC, tile_t) bf16
                stream(2),                 # gt indices tile (2, tile_t) int32
                resident((HID, NUM_PC)),   # We_pc^T
                resident((HID, NUM_PC)),   # We_bass^T
                resident((HID, 1)),        # be^T
                resident((D0, HID)),       # W0^T
                resident((D0, 1)),         # b0^T
                resident((HID, D0)),       # U0^T
                resident((D1, HID)),       # W1^T
                resident((D1, 1)),         # b1^T
            ],
            out_specs=pl.BlockSpec((None, None, 1, 1), lambda b, t: (b, t, 0, 0)),
        ),
        compiler_params=pltpu.CompilerParams(
            dimension_semantics=("parallel", "parallel")),
    )(pc_b, bass_b, gt_idx,
      wpc, wbass, beT, w0T, b0T, u0T, w1T, b1T)

    return jnp.sum(partials) / N   # mean over batch*frames, summed over components


# ---------------------------- reference (pure JAX) ----------------------------
def _reference_loss(pc_act, bass_pc, gt0_idx, gt1_idx, p):
    x = jnp.transpose(jnp.concatenate([pc_act, bass_pc], axis=1), (0, 2, 1)).reshape(-1, C_IN)
    g0 = jax.nn.one_hot(gt0_idx.reshape(-1), D0, dtype=jnp.float32)
    g1 = jax.nn.one_hot(gt1_idx.reshape(-1), D1, dtype=jnp.float32)
    emb = jax.nn.relu(x @ p["We"] + p["be"])
    l0 = emb @ p["W0"] + p["b0"]
    ce0 = jax.nn.logsumexp(l0, axis=-1) - jnp.sum(g0 * l0, axis=-1)
    ctx = jax.nn.relu(emb + g0 @ p["U0"])
    l1 = ctx @ p["W1"] + p["b1"]
    ce1 = jax.nn.logsumexp(l1, axis=-1) - jnp.sum(g1 * l1, axis=-1)
    return jnp.mean(ce0 + ce1)


# ---------------------------- parameter / data setup --------------------------
def _init_params(key):
    ks = jax.random.split(key, 8)
    scale = 0.1
    return {
        "We": scale * jax.random.normal(ks[0], (C_IN, HID), jnp.float32),
        "be": scale * jax.random.normal(ks[1], (1, HID), jnp.float32),
        "W0": scale * jax.random.normal(ks[2], (HID, D0), jnp.float32),
        "b0": scale * jax.random.normal(ks[3], (1, D0), jnp.float32),
        "U0": scale * jax.random.normal(ks[4], (D0, HID), jnp.float32),
        "W1": scale * jax.random.normal(ks[5], (HID, D1), jnp.float32),
        "b1": scale * jax.random.normal(ks[6], (1, D1), jnp.float32),
    }


def _harmony_pc_vector(batch_size):
    # mirrors HaranaModel.compute_harmony_vector (RQ): major-triad-ish template
    # per (root, quality) harmony.  Constant buffer; not used in the loss.
    v = jnp.zeros((NUM_HARMONIES, NUM_PC), jnp.float32)
    roots = jnp.arange(NUM_HARMONIES) // NUM_QUALITY
    for off in (0, 4, 7):
        v = v.at[jnp.arange(NUM_HARMONIES), (roots + off) % NUM_PC].set(1.0)
    return jnp.tile(v[None], (batch_size, 1, 1))


def _make_inputs(key, B, T):
    k1, k2, k3, k4 = jax.random.split(key, 4)
    pc_act = (jax.random.uniform(k1, (B, NUM_PC, T)) > 0.5).astype(jnp.float32)
    bass_pc = jax.nn.one_hot(
        jax.random.randint(k2, (B, T), 0, NUM_PC), NUM_PC).transpose(0, 2, 1).astype(jnp.float32)
    gt0_idx = jax.random.randint(k3, (B, T), 0, D0)
    gt1_idx = jax.random.randint(k4, (B, T), 0, D1)
    return pc_act, bass_pc, gt0_idx, gt1_idx


if __name__ == "__main__":
    key = jax.random.PRNGKey(0)
    kp, kd = jax.random.split(key, 2)

    B, T = 2, 16
    params = _init_params(kp)
    _ = _harmony_pc_vector(B)  # constructed as in __init__, detached/unused in forward

    pc_act, bass_pc, gt0_idx, gt1_idx = _make_inputs(kd, B, T)
    loss = note2harmony_nade_loss(pc_act, bass_pc, gt0_idx, gt1_idx, params)
    loss = jax.block_until_ready(loss)
    ref = _reference_loss(pc_act, bass_pc, gt0_idx, gt1_idx, params)
    assert jnp.allclose(loss, ref, rtol=1e-4, atol=1e-4), (loss, ref)

    # second check: T not a multiple of the time tile -> exercises cdiv grid + tail masking
    pc2, bass2, g0_2, g1_2 = _make_inputs(jax.random.PRNGKey(1), 2, 650)
    loss2 = jax.block_until_ready(note2harmony_nade_loss(pc2, bass2, g0_2, g1_2, params))
    ref2 = _reference_loss(pc2, bass2, g0_2, g1_2, params)
    assert jnp.allclose(loss2, ref2, rtol=1e-4, atol=1e-4), (loss2, ref2)

    print("KERNEL_OK")
</pallas_src>

<mosaic_0001>
module attributes {stable_mosaic.version = 11 : i64} {
  func.func @kernel(%arg0: i32, %arg1: i32, %arg2: memref<1x12x16xbf16, #tpu.memory_space<vmem>>, %arg3: memref<1x12x16xbf16, #tpu.memory_space<vmem>>, %arg4: memref<1x2x16xi32, #tpu.memory_space<vmem>>, %arg5: memref<32x12xf32, #tpu.memory_space<vmem>>, %arg6: memref<32x12xf32, #tpu.memory_space<vmem>>, %arg7: memref<32x1xf32, #tpu.memory_space<vmem>>, %arg8: memref<12x32xf32, #tpu.memory_space<vmem>>, %arg9: memref<12x1xf32, #tpu.memory_space<vmem>>, %arg10: memref<32x12xf32, #tpu.memory_space<vmem>>, %arg11: memref<4x32xf32, #tpu.memory_space<vmem>>, %arg12: memref<4x1xf32, #tpu.memory_space<vmem>>, %arg13: memref<1x1x1x1xf32, #tpu.memory_space<vmem>>) attributes {dimension_semantics = [#tpu.dimension_semantics<parallel>, #tpu.dimension_semantics<parallel>], iteration_bounds = array<i64: 2, 1>, scalar_prefetch = 0 : i64, scratch_operands = 0 : i64, tpu.core_type = #tpu.core_type<tc>, window_params = [{transform_indices = @transform_0, window_bounds = array<i64: 1, 12, 16>}, {transform_indices = @transform_1, window_bounds = array<i64: 1, 12, 16>}, {transform_indices = @transform_2, window_bounds = array<i64: 1, 2, 16>}, {pipeline_mode = #tpu.pipeline_mode<synchronous>, transform_indices = @transform_3, window_bounds = array<i64: 32, 12>}, {pipeline_mode = #tpu.pipeline_mode<synchronous>, transform_indices = @transform_4, window_bounds = array<i64: 32, 12>}, {pipeline_mode = #tpu.pipeline_mode<synchronous>, transform_indices = @transform_5, window_bounds = array<i64: 32, 1>}, {pipeline_mode = #tpu.pipeline_mode<synchronous>, transform_indices = @transform_6, window_bounds = array<i64: 12, 32>}, {pipeline_mode = #tpu.pipeline_mode<synchronous>, transform_indices = @transform_7, window_bounds = array<i64: 12, 1>}, {pipeline_mode = #tpu.pipeline_mode<synchronous>, transform_indices = @transform_8, window_bounds = array<i64: 32, 12>}, {pipeline_mode = #tpu.pipeline_mode<synchronous>, transform_indices = @transform_9, window_bounds = array<i64: 4, 32>}, {pipeline_mode = #tpu.pipeline_mode<synchronous>, transform_indices = @transform_10, window_bounds = array<i64: 4, 1>}, {transform_indices = @transform_11, window_bounds = array<i64: 1, 1, 1, 1>}]} {
    %c0 = arith.constant 0 : index
    %c0_0 = arith.constant 0 : index
    %c0_1 = arith.constant 0 : index
    %0 = vector.load %arg2[%c0, %c0_0, %c0_1] : memref<1x12x16xbf16, #tpu.memory_space<vmem>>, vector<1x12x16xbf16>
    %1 = vector.shape_cast %0 : vector<1x12x16xbf16> to vector<12x16xbf16>
    %2 = arith.extf %1 : vector<12x16xbf16> to vector<12x16xf32>
    %c0_2 = arith.constant 0 : index
    %c0_3 = arith.constant 0 : index
    %c0_4 = arith.constant 0 : index
    %3 = vector.load %arg3[%c0_2, %c0_3, %c0_4] : memref<1x12x16xbf16, #tpu.memory_space<vmem>>, vector<1x12x16xbf16>
    %4 = vector.shape_cast %3 : vector<1x12x16xbf16> to vector<12x16xbf16>
    %5 = arith.extf %4 : vector<12x16xbf16> to vector<12x16xf32>
    %c0_5 = arith.constant 0 : index
    %c0_6 = arith.constant 0 : index
    %6 = vector.load %arg5[%c0_5, %c0_6] : memref<32x12xf32, #tpu.memory_space<vmem>>, vector<32x12xf32>
    %cst = arith.constant dense<0.000000e+00> : vector<32x16xf32>
    %7 = tpu.matmul %6, %2, %cst {dimension_numbers = #tpu.dot_dimension_numbers<[1], [0], [0], [1], [0, 0, 1, 1], [], []>} : vector<32x12xf32>, vector<12x16xf32>, vector<32x16xf32> -> vector<32x16xf32>
    %c0_7 = arith.constant 0 : index
    %c0_8 = arith.constant 0 : index
    %8 = vector.load %arg6[%c0_7, %c0_8] : memref<32x12xf32, #tpu.memory_space<vmem>>, vector<32x12xf32>
    %cst_9 = arith.constant dense<0.000000e+00> : vector<32x16xf32>
    %9 = tpu.matmul %8, %5, %cst_9 {dimension_numbers = #tpu.dot_dimension_numbers<[1], [0], [0], [1], [0, 0, 1, 1], [], []>} : vector<32x12xf32>, vector<12x16xf32>, vector<32x16xf32> -> vector<32x16xf32>
    %10 = arith.addf %7, %9 : vector<32x16xf32>
    %c0_10 = arith.constant 0 : index
    %c0_11 = arith.constant 0 : index
    %11 = vector.load %arg7[%c0_10, %c0_11] : memref<32x1xf32, #tpu.memory_space<vmem>>, vector<32x1xf32>
    %12 = vector.broadcast %11 : vector<32x1xf32> to vector<32x16xf32>
    %13 = arith.addf %10, %12 : vector<32x16xf32>
    %cst_12 = arith.constant 0.000000e+00 : f32
    %14 = vector.broadcast %cst_12 : f32 to vector<32x16xf32>
    %15 = arith.maximumf %13, %14 : vector<32x16xf32>
    %c0_13 = arith.constant 0 : index
    %c0_14 = arith.constant 0 : index
    %c0_15 = arith.constant 0 : index
    %16 = vector.load %arg4[%c0_13, %c0_14, %c0_15] : memref<1x2x16xi32, #tpu.memory_space<vmem>>, vector<1x2x16xi32>
    %17 = vector.shape_cast %16 : vector<1x2x16xi32> to vector<2x16xi32>
    %18 = vector.extract_strided_slice %17 {offsets = [0, 0], sizes = [1, 16], strides = [1, 1]} : vector<2x16xi32> to vector<1x16xi32>
    %19 = vector.extract_strided_slice %17 {offsets = [1, 0], sizes = [1, 16], strides = [1, 1]} : vector<2x16xi32> to vector<1x16xi32>
    %20 = tpu.iota {dimensions = array<i32: 0>} : vector<12x16xi32>
    %21 = vector.broadcast %18 : vector<1x16xi32> to vector<12x16xi32>
    %22 = arith.cmpi eq, %20, %21 : vector<12x16xi32>
    %23 = arith.extui %22 : vector<12x16xi1> to vector<12x16xi32>
    %24 = arith.sitofp %23 : vector<12x16xi32> to vector<12x16xf32>
    %25 = tpu.iota {dimensions = array<i32: 0>} : vector<4x16xi32>
    %26 = vector.broadcast %19 : vector<1x16xi32> to vector<4x16xi32>
    %27 = arith.cmpi eq, %25, %26 : vector<4x16xi32>
    %28 = arith.extui %27 : vector<4x16xi1> to vector<4x16xi32>
    %29 = arith.sitofp %28 : vector<4x16xi32> to vector<4x16xf32>
    %c0_16 = arith.constant 0 : index
    %c0_17 = arith.constant 0 : index
    %30 = vector.load %arg8[%c0_16, %c0_17] : memref<12x32xf32, #tpu.memory_space<vmem>>, vector<12x32xf32>
    %cst_18 = arith.constant dense<0.000000e+00> : vector<12x16xf32>
    %31 = tpu.matmul %30, %15, %cst_18 {dimension_numbers = #tpu.dot_dimension_numbers<[1], [0], [0], [1], [0, 0, 1, 1], [], []>} : vector<12x32xf32>, vector<32x16xf32>, vector<12x16xf32> -> vector<12x16xf32>
    %c0_19 = arith.constant 0 : index
    %c0_20 = arith.constant 0 : index
    %32 = vector.load %arg9[%c0_19, %c0_20] : memref<12x1xf32, #tpu.memory_space<vmem>>, vector<12x1xf32>
    %33 = vector.broadcast %32 : vector<12x1xf32> to vector<12x16xf32>
    %34 = arith.addf %31, %33 : vector<12x16xf32>
    %cst_21 = arith.constant dense<0xFF800000> : vector<16xf32>
    %35 = vector.multi_reduction <maximumf>, %34, %cst_21 [0] : vector<12x16xf32> to vector<16xf32>
    %36 = vector.shape_cast %35 : vector<16xf32> to vector<1x16xf32>
    %37 = vector.broadcast %36 : vector<1x16xf32> to vector<12x16xf32>
    %38 = arith.subf %34, %37 : vector<12x16xf32>
    %39 = math.exp %38 : vector<12x16xf32>
    %cst_22 = arith.constant dense<0.000000e+00> : vector<16xf32>
    %40 = vector.multi_reduction <add>, %39, %cst_22 [0] : vector<12x16xf32> to vector<16xf32>
    %41 = vector.shape_cast %40 : vector<16xf32> to vector<1x16xf32>
    %42 = math.log %41 : vector<1x16xf32>
    %43 = arith.addf %36, %42 : vector<1x16xf32>
    %44 = arith.mulf %24, %34 : vector<12x16xf32>
    %cst_23 = arith.constant dense<0.000000e+00> : vector<16xf32>
    %45 = vector.multi_reduction <add>, %44, %cst_23 [0] : vector<12x16xf32> to vector<16xf32>
    %46 = vector.shape_cast %45 : vector<16xf32> to vector<1x16xf32>
    %c0_24 = arith.constant 0 : index
    %c0_25 = arith.constant 0 : index
    %47 = vector.load %arg10[%c0_24, %c0_25] : memref<32x12xf32, #tpu.memory_space<vmem>>, vector<32x12xf32>
    %cst_26 = arith.constant dense<0.000000e+00> : vector<32x16xf32>
    %48 = tpu.matmul %47, %24, %cst_26 {dimension_numbers = #tpu.dot_dimension_numbers<[1], [0], [0], [1], [0, 0, 1, 1], [], []>} : vector<32x12xf32>, vector<12x16xf32>, vector<32x16xf32> -> vector<32x16xf32>
    %49 = arith.addf %15, %48 : vector<32x16xf32>
    %cst_27 = arith.constant 0.000000e+00 : f32
    %50 = vector.broadcast %cst_27 : f32 to vector<32x16xf32>
    %51 = arith.maximumf %49, %50 : vector<32x16xf32>
    %c0_28 = arith.constant 0 : index
    %c0_29 = arith.constant 0 : index
    %52 = vector.load %arg11[%c0_28, %c0_29] : memref<4x32xf32, #tpu.memory_space<vmem>>, vector<4x32xf32>
    %cst_30 = arith.constant dense<0.000000e+00> : vector<4x16xf32>
    %53 = tpu.matmul %52, %51, %cst_30 {dimension_numbers = #tpu.dot_dimension_numbers<[1], [0], [0], [1], [0, 0, 1, 1], [], []>} : vector<4x32xf32>, vector<32x16xf32>, vector<4x16xf32> -> vector<4x16xf32>
    %c0_31 = arith.constant 0 : index
    %c0_32 = arith.constant 0 : index
    %54 = vector.load %arg12[%c0_31, %c0_32] : memref<4x1xf32, #tpu.memory_space<vmem>>, vector<4x1xf32>
    %55 = vector.broadcast %54 : vector<4x1xf32> to vector<4x16xf32>
    %56 = arith.addf %53, %55 : vector<4x16xf32>
    %cst_33 = arith.constant dense<0xFF800000> : vector<16xf32>
    %57 = vector.multi_reduction <maximumf>, %56, %cst_33 [0] : vector<4x16xf32> to vector<16xf32>
    %58 = vector.shape_cast %57 : vector<16xf32> to vector<1x16xf32>
    %59 = vector.broadcast %58 : vector<1x16xf32> to vector<4x16xf32>
    %60 = arith.subf %56, %59 : vector<4x16xf32>
    %61 = math.exp %60 : vector<4x16xf32>
    %cst_34 = arith.constant dense<0.000000e+00> : vector<16xf32>
    %62 = vector.multi_reduction <add>, %61, %cst_34 [0] : vector<4x16xf32> to vector<16xf32>
    %63 = vector.shape_cast %62 : vector<16xf32> to vector<1x16xf32>
    %64 = math.log %63 : vector<1x16xf32>
    %65 = arith.addf %58, %64 : vector<1x16xf32>
    %66 = arith.mulf %29, %56 : vector<4x16xf32>
    %cst_35 = arith.constant dense<0.000000e+00> : vector<16xf32>
    %67 = vector.multi_reduction <add>, %66, %cst_35 [0] : vector<4x16xf32> to vector<16xf32>
    %68 = vector.shape_cast %67 : vector<16xf32> to vector<1x16xf32>
    %69 = arith.subf %43, %46 : vector<1x16xf32>
    %70 = arith.subf %65, %68 : vector<1x16xf32>
    %71 = arith.addf %69, %70 : vector<1x16xf32>
    %c16_i32 = arith.constant 16 : i32
    %72 = arith.muli %arg1, %c16_i32 : i32
    %73 = tpu.iota {dimensions = array<i32: 1>} : vector<1x16xi32>
    %74 = vector.broadcast %72 : i32 to vector<1x16xi32>
    %75 = arith.addi %74, %73 : vector<1x16xi32>
    %c16_i32_36 = arith.constant 16 : i32
    %76 = vector.broadcast %c16_i32_36 : i32 to vector<1x16xi32>
    %77 = arith.cmpi slt, %75, %76 : vector<1x16xi32>
    %cst_37 = arith.constant 0.000000e+00 : f32
    %78 = vector.broadcast %cst_37 : f32 to vector<1x16xf32>
    %79 = arith.select %77, %71, %78 : vector<1x16xi1>, vector<1x16xf32>
    %cst_38 = arith.constant dense<0.000000e+00> : vector<1xf32>
    %80 = vector.multi_reduction <add>, %79, %cst_38 [1] : vector<1x16xf32> to vector<1xf32>
    %81 = vector.shape_cast %80 : vector<1xf32> to vector<1x1xf32>
    %c0_39 = arith.constant 0 : index
    %c0_40 = arith.constant 0 : index
    %c0_41 = arith.constant 0 : index
    %c0_42 = arith.constant 0 : index
    %82 = vector.load %arg13[%c0_39, %c0_40, %c0_41, %c0_42] : memref<1x1x1x1xf32, #tpu.memory_space<vmem>>, vector<1x1x1x1xf32>
    %83 = vector.shape_cast %82 : vector<1x1x1x1xf32> to vector<1x1xf32>
    %84 = vector.shape_cast %81 : vector<1x1xf32> to vector<1x1x1x1xf32>
    tpu.vector_store %arg13[%c0_39, %c0_40, %c0_41, %c0_42], %84 {strides = array<i32>} : memref<1x1x1x1xf32, #tpu.memory_space<vmem>>, vector<1x1x1x1xf32>,
    return
  }
  func.func @transform_0(%arg0: i32, %arg1: i32) -> (i32, i32, i32) {
    %c0_i32 = arith.constant 0 : i32
    %c0_i32_0 = arith.constant 0 : i32
    return %arg0, %c0_i32, %arg1 : i32, i32, i32
  }
  func.func @transform_1(%arg0: i32, %arg1: i32) -> (i32, i32, i32) {
    %c0_i32 = arith.constant 0 : i32
    %c0_i32_0 = arith.constant 0 : i32
    return %arg0, %c0_i32, %arg1 : i32, i32, i32
  }
  func.func @transform_2(%arg0: i32, %arg1: i32) -> (i32, i32, i32) {
    %c0_i32 = arith.constant 0 : i32
    %c0_i32_0 = arith.constant 0 : i32
    return %arg0, %c0_i32, %arg1 : i32, i32, i32
  }
  func.func @transform_3(%arg0: i32, %arg1: i32) -> (i32, i32) {
    %c0_i32 = arith.constant 0 : i32
    %c0_i32_0 = arith.constant 0 : i32
    %c0_i32_1 = arith.constant 0 : i32
    return %c0_i32, %c0_i32_0 : i32, i32
  }
  func.func @transform_4(%arg0: i32, %arg1: i32) -> (i32, i32) {
    %c0_i32 = arith.constant 0 : i32
    %c0_i32_0 = arith.constant 0 : i32
    %c0_i32_1 = arith.constant 0 : i32
    return %c0_i32, %c0_i32_0 : i32, i32
  }
  func.func @transform_5(%arg0: i32, %arg1: i32) -> (i32, i32) {
    %c0_i32 = arith.constant 0 : i32
    %c0_i32_0 = arith.constant 0 : i32
    %c0_i32_1 = arith.constant 0 : i32
    return %c0_i32, %c0_i32_0 : i32, i32
  }
  func.func @transform_6(%arg0: i32, %arg1: i32) -> (i32, i32) {
    %c0_i32 = arith.constant 0 : i32
    %c0_i32_0 = arith.constant 0 : i32
    %c0_i32_1 = arith.constant 0 : i32
    return %c0_i32, %c0_i32_0 : i32, i32
  }
  func.func @transform_7(%arg0: i32, %arg1: i32) -> (i32, i32) {
    %c0_i32 = arith.constant 0 : i32
    %c0_i32_0 = arith.constant 0 : i32
    %c0_i32_1 = arith.constant 0 : i32
    return %c0_i32, %c0_i32_0 : i32, i32
  }
  func.func @transform_8(%arg0: i32, %arg1: i32) -> (i32, i32) {
    %c0_i32 = arith.constant 0 : i32
    %c0_i32_0 = arith.constant 0 : i32
    %c0_i32_1 = arith.constant 0 : i32
    return %c0_i32, %c0_i32_0 : i32, i32
  }
  func.func @transform_9(%arg0: i32, %arg1: i32) -> (i32, i32) {
    %c0_i32 = arith.constant 0 : i32
    %c0_i32_0 = arith.constant 0 : i32
    %c0_i32_1 = arith.constant 0 : i32
    return %c0_i32, %c0_i32_0 : i32, i32
  }
  func.func @transform_10(%arg0: i32, %arg1: i32) -> (i32, i32) {
    %c0_i32 = arith.constant 0 : i32
    %c0_i32_0 = arith.constant 0 : i32
    %c0_i32_1 = arith.constant 0 : i32
    return %c0_i32, %c0_i32_0 : i32, i32
  }
  func.func @transform_11(%arg0: i32, %arg1: i32) -> (i32, i32, i32, i32) {
    %c0_i32 = arith.constant 0 : i32
    %c0_i32_0 = arith.constant 0 : i32
    %c0_i32_1 = arith.constant 0 : i32
    return %arg0, %arg1, %c0_i32, %c0_i32_0 : i32, i32, i32, i32
  }
}

</mosaic_0001>

<llo_original>
// kernel: tpu_custom_call.1
$region0: #{tpu_custom_call.1}
  #allocation0 [shape = 'u32[]', space=smem, size = 0x4, offset = 0x4, fixed_abs, tag = 'smem constant byte address 0x4 - core index']
  #allocation1 [shape = 'u32[144,128]{1,0:T(1,128)}', space=vmem, size = 0x12000, scoped, tag = 'internal scratch']
  %s0 = inlined_call_operand.vmem [shape: bf16[2,12,16], index: 0, kind: input, shape index: {}]
  %s1 = inlined_call_operand.vmem [shape: bf16[2,12,16], index: 1, kind: input, shape index: {}]
  %s2 = inlined_call_operand.vmem [shape: s32[2,2,16], index: 2, kind: input, shape index: {}]
  %s3 = inlined_call_operand.vmem [shape: f32[32,12], index: 3, kind: input, shape index: {}]
  %s4 = inlined_call_operand.vmem [shape: f32[32,12], index: 4, kind: input, shape index: {}]
  %s5 = inlined_call_operand.vmem [shape: f32[32,1], index: 5, kind: input, shape index: {}]
  %s6 = inlined_call_operand.vmem [shape: f32[12,32], index: 6, kind: input, shape index: {}]
  %s7 = inlined_call_operand.vmem [shape: f32[12,1], index: 7, kind: input, shape index: {}]
  %s8 = inlined_call_operand.vmem [shape: f32[32,12], index: 8, kind: input, shape index: {}]
  %s9 = inlined_call_operand.vmem [shape: f32[4,32], index: 9, kind: input, shape index: {}]
  %s10 = inlined_call_operand.vmem [shape: f32[4,1], index: 10, kind: input, shape index: {}]
  %s11 = inlined_call_operand.vmem [shape: f32[2,1,1,1], index: 11, kind: output, shape index: {}]
  %s12 = sld [smem:[#allocation0]]
  $region77: #{tpu_custom_call.1} parent=0
    _
  %s14 = ssub.s32 1, %s12
  %s15 = scalar_select 0, %s14, %s12
  loop: start=0, step=1, limit=4
  $region2: #{tpu_custom_call.1} parent=0 // loop_pre_header
    _
  $region3: #{tpu_custom_call.1} parent=0 // loop_header
    %s17 = sphi 0, %s21
    %p18 = scmp.ge.s32.totalorder %s17, 4
    %s24 = sphi 0, %s36
    %s25 = sphi 0, %s32
    %s26 = sphi 0, %s24
    %s27 = sphi 0, %s25
    %s28 = sphi 0, %s26
    %s29 = sphi 0, %s27
    %s41 = sphi 0, %s43
    %s44 = sphi 0, %s41
    %s45 = sphi 0, %s44
    %s61 = sphi 0, %s45
    %s69 = sphi 0, %s71
    %s72 = sphi 0, %s69
    %s73 = sphi 0, %s72
    %s89 = sphi 0, %s73
    %s97 = sphi 0, %s99
    %s100 = sphi 0, %s97
    %s101 = sphi 0, %s100
    %s117 = sphi 0, %s101
    %s121 = sphi 0, %s121
    %s123 = sphi 0, %s121
    %s124 = sphi 0, %s123
    %s138 = sphi 0, %s124
    %s142 = sphi 0, %s142
    %s144 = sphi 0, %s142
    %s145 = sphi 0, %s144
    %s159 = sphi 0, %s145
    %s163 = sphi 0, %s163
    %s165 = sphi 0, %s163
    %s166 = sphi 0, %s165
    %s180 = sphi 0, %s166
    %s184 = sphi 0, %s184
    %s186 = sphi 0, %s184
    %s187 = sphi 0, %s186
    %s201 = sphi 0, %s187
    %s205 = sphi 0, %s205
    %s207 = sphi 0, %s205
    %s208 = sphi 0, %s207
    %s222 = sphi 0, %s208
    %s226 = sphi 0, %s226
    %s228 = sphi 0, %s226
    %s229 = sphi 0, %s228
    %s243 = sphi 0, %s229
    %s247 = sphi 0, %s247
    %s249 = sphi 0, %s247
    %s250 = sphi 0, %s249
    %s264 = sphi 0, %s250
    %s268 = sphi 0, %s268
    %s270 = sphi 0, %s268
    %s271 = sphi 0, %s270
    %s285 = sphi 0, %s271
    %s293 = sphi 0, %s295
    %s296 = sphi 0, %s293
    %s297 = sphi 0, %s296
    %s313 = sphi 0, %s297
  $region4: #{tpu_custom_call.1} parent=0 // loop_header_branch
    %20 = sbr.rel (%p18) target = $region8
  $region5: #{tpu_custom_call.1} parent=0 // loop_body
    %s22 = ssub.s32 %s17, 1
    %s23 = ssub.s32 %s17, 2
    %s30 = sadd.s32 1, %s25
    %p31 = scmp.ge.s32.totalorder %s30, 1
    %s32 = scalar_select %p31, 0, %s30
    %s33 = sadd.s32 1, %s24
    %s34 = scalar_select %p31, %s33, %s24
    %p35 = scmp.ge.s32.totalorder %s34, 2
    %s36 = scalar_select %p35, 0, %s34
    %s37 = ssub.s32 %s24, %s36
    %s38 = ssub.s32 %s25, %s32
    %s39 = sor.u32 %s37, %s38
    %p40 = scmp.eq.s32.totalorder %s39, 0
    %s42 = sadd.s32 %s41, 1
    %s43 = scalar_select %p40, %s41, %s42
    %p46 = pneg %p40
    %p47 = scmp.eq.s32.totalorder %s17, 1
    %p48 = por %p46, %p47
    %p49 = scmp.ne.s32.totalorder %s41, %s44
    %p50 = scmp.eq.s32.totalorder %s17, 0
    %p51 = por %p49, %p50
    %p52 = scmp.ne.s32.totalorder %s41, %s44
    %p53 = scmp.eq.s32.totalorder %s22, 1
    %p54 = por %p52, %p53
    %p55 = scmp.ne.s32.totalorder %s44, %s45
    %p56 = scmp.eq.s32.totalorder %s22, 0
    %p57 = por %p55, %p56
    %p58 = scmp.ne.s32.totalorder %s44, %s45
    %p59 = scmp.eq.s32.totalorder %s23, 1
    %p60 = por %p58, %p59
    %p62 = scmp.ne.s32.totalorder %s45, %s61
    %p63 = scmp.eq.s32.totalorder %s23, 0
    %p64 = por %p62, %p63
    %s65 = ssub.s32 %s24, %s36
    %s66 = ssub.s32 %s25, %s32
    %s67 = sor.u32 %s65, %s66
    %p68 = scmp.eq.s32.totalorder %s67, 0
    %s70 = sadd.s32 %s69, 1
    %s71 = scalar_select %p68, %s69, %s70
    %p74 = pneg %p68
    %p75 = scmp.eq.s32.totalorder %s17, 1
    %p76 = por %p74, %p75
    %p77 = scmp.ne.s32.totalorder %s69, %s72
    %p78 = scmp.eq.s32.totalorder %s17, 0
    %p79 = por %p77, %p78
    %p80 = scmp.ne.s32.totalorder %s69, %s72
    %p81 = scmp.eq.s32.totalorder %s22, 1
    %p82 = por %p80, %p81
    %p83 = scmp.ne.s32.totalorder %s72, %s73
    %p84 = scmp.eq.s32.totalorder %s22, 0
    %p85 = por %p83, %p84
    %p86 = scmp.ne.s32.totalorder %s72, %s73
    %p87 = scmp.eq.s32.totalorder %s23, 1
    %p88 = por %p86, %p87
    %p90 = scmp.ne.s32.totalorder %s73, %s89
    %p91 = scmp.eq.s32.totalorder %s23, 0
    %p92 = por %p90, %p91
    %s93 = ssub.s32 %s24, %s36
    %s94 = ssub.s32 %s25, %s32
    %s95 = sor.u32 %s93, %s94
    %p96 = scmp.eq.s32.totalorder %s95, 0
    %s98 = sadd.s32 %s97, 1
    %s99 = scalar_select %p96, %s97, %s98
    %p102 = pneg %p96
    %p103 = scmp.eq.s32.totalorder %s17, 1
    %p104 = por %p102, %p103
    %p105 = scmp.ne.s32.totalorder %s97, %s100
    %p106 = scmp.eq.s32.totalorder %s17, 0
    %p107 = por %p105, %p106
    %p108 = scmp.ne.s32.totalorder %s97, %s100
    %p109 = scmp.eq.s32.totalorder %s22, 1
    %p110 = por %p108, %p109
    %p111 = scmp.ne.s32.totalorder %s100, %s101
    %p112 = scmp.eq.s32.totalorder %s22, 0
    %p113 = por %p111, %p112
    %p114 = scmp.ne.s32.totalorder %s100, %s101
    %p115 = scmp.eq.s32.totalorder %s23, 1
    %p116 = por %p114, %p115
    %p118 = scmp.ne.s32.totalorder %s101, %s117
    %p119 = scmp.eq.s32.totalorder %s23, 0
    %p120 = por %p118, %p119
    %s122 = sadd.s32 %s121, 1
    %p125 = scmp.eq.s32.totalorder %s17, 1
    %p126 = scmp.ne.s32.totalorder %s121, %s123
    %p127 = scmp.eq.s32.totalorder %s17, 0
    %p128 = por %p126, %p127
    %p129 = scmp.ne.s32.totalorder %s121, %s123
    %p130 = scmp.eq.s32.totalorder %s22, 1
    %p131 = por %p129, %p130
    %p132 = scmp.ne.s32.totalorder %s123, %s124
    %p133 = scmp.eq.s32.totalorder %s22, 0
    %p134 = por %p132, %p133
    %p135 = scmp.ne.s32.totalorder %s123, %s124
    %p136 = scmp.eq.s32.totalorder %s23, 1
    %p137 = por %p135, %p136
    %p139 = scmp.ne.s32.totalorder %s124, %s138
    %p140 = scmp.eq.s32.totalorder %s23, 0
    %p141 = por %p139, %p140
    %s143 = sadd.s32 %s142, 1
    %p146 = scmp.eq.s32.totalorder %s17, 1
    %p147 = scmp.ne.s32.totalorder %s142, %s144
    %p148 = scmp.eq.s32.totalorder %s17, 0
    %p149 = por %p147, %p148
    %p150 = scmp.ne.s32.totalorder %s142, %s144
    %p151 = scmp.eq.s32.totalorder %s22, 1
    %p152 = por %p150, %p151
    %p153 = scmp.ne.s32.totalorder %s144, %s145
    %p154 = scmp.eq.s32.totalorder %s22, 0
    %p155 = por %p153, %p154
    %p156 = scmp.ne.s32.totalorder %s144, %s145
    %p157 = scmp.eq.s32.totalorder %s23, 1
    %p158 = por %p156, %p157
    %p160 = scmp.ne.s32.totalorder %s145, %s159
    %p161 = scmp.eq.s32.totalorder %s23, 0
    %p162 = por %p160, %p161
    %s164 = sadd.s32 %s163, 1
    %p167 = scmp.eq.s32.totalorder %s17, 1
    %p168 = scmp.ne.s32.totalorder %s163, %s165
    %p169 = scmp.eq.s32.totalorder %s17, 0
    %p170 = por %p168, %p169
    %p171 = scmp.ne.s32.totalorder %s163, %s165
    %p172 = scmp.eq.s32.totalorder %s22, 1
    %p173 = por %p171, %p172
    %p174 = scmp.ne.s32.totalorder %s165, %s166
    %p175 = scmp.eq.s32.totalorder %s22, 0
    %p176 = por %p174, %p175
    %p177 = scmp.ne.s32.totalorder %s165, %s166
    %p178 = scmp.eq.s32.totalorder %s23, 1
    %p179 = por %p177, %p178
    %p181 = scmp.ne.s32.totalorder %s166, %s180
    %p182 = scmp.eq.s32.totalorder %s23, 0
    %p183 = por %p181, %p182
    %s185 = sadd.s32 %s184, 1
    %p188 = scmp.eq.s32.totalorder %s17, 1
    %p189 = scmp.ne.s32.totalorder %s184, %s186
    %p190 = scmp.eq.s32.totalorder %s17, 0
    %p191 = por %p189, %p190
    %p192 = scmp.ne.s32.totalorder %s184, %s186
    %p193 = scmp.eq.s32.totalorder %s22, 1
    %p194 = por %p192, %p193
    %p195 = scmp.ne.s32.totalorder %s186, %s187
    %p196 = scmp.eq.s32.totalorder %s22, 0
    %p197 = por %p195, %p196
    %p198 = scmp.ne.s32.totalorder %s186, %s187
    %p199 = scmp.eq.s32.totalorder %s23, 1
    %p200 = por %p198, %p199
    %p202 = scmp.ne.s32.totalorder %s187, %s201
    %p203 = scmp.eq.s32.totalorder %s23, 0
    %p204 = por %p202, %p203
    %s206 = sadd.s32 %s205, 1
    %p209 = scmp.eq.s32.totalorder %s17, 1
    %p210 = scmp.ne.s32.totalorder %s205, %s207
    %p211 = scmp.eq.s32.totalorder %s17, 0
    %p212 = por %p210, %p211
    %p213 = scmp.ne.s32.totalorder %s205, %s207
    %p214 = scmp.eq.s32.totalorder %s22, 1
    %p215 = por %p213, %p214
    %p216 = scmp.ne.s32.totalorder %s207, %s208
    %p217 = scmp.eq.s32.totalorder %s22, 0
    %p218 = por %p216, %p217
    %p219 = scmp.ne.s32.totalorder %s207, %s208
    %p220 = scmp.eq.s32.totalorder %s23, 1
    %p221 = por %p219, %p220
    %p223 = scmp.ne.s32.totalorder %s208, %s222
    %p224 = scmp.eq.s32.totalorder %s23, 0
    %p225 = por %p223, %p224
    %s227 = sadd.s32 %s226, 1
    %p230 = scmp.eq.s32.totalorder %s17, 1
    %p231 = scmp.ne.s32.totalorder %s226, %s228
    %p232 = scmp.eq.s32.totalorder %s17, 0
    %p233 = por %p231, %p232
    %p234 = scmp.ne.s32.totalorder %s226, %s228
    %p235 = scmp.eq.s32.totalorder %s22, 1
    %p236 = por %p234, %p235
    %p237 = scmp.ne.s32.totalorder %s228, %s229
    %p238 = scmp.eq.s32.totalorder %s22, 0
    %p239 = por %p237, %p238
    %p240 = scmp.ne.s32.totalorder %s228, %s229
    %p241 = scmp.eq.s32.totalorder %s23, 1
    %p242 = por %p240, %p241
    %p244 = scmp.ne.s32.totalorder %s229, %s243
    %p245 = scmp.eq.s32.totalorder %s23, 0
    %p246 = por %p244, %p245
    %s248 = sadd.s32 %s247, 1
    %p251 = scmp.eq.s32.totalorder %s17, 1
    %p252 = scmp.ne.s32.totalorder %s247, %s249
    %p253 = scmp.eq.s32.totalorder %s17, 0
    %p254 = por %p252, %p253
    %p255 = scmp.ne.s32.totalorder %s247, %s249
    %p256 = scmp.eq.s32.totalorder %s22, 1
    %p257 = por %p255, %p256
    %p258 = scmp.ne.s32.totalorder %s249, %s250
    %p259 = scmp.eq.s32.totalorder %s22, 0
    %p260 = por %p258, %p259
    %p261 = scmp.ne.s32.totalorder %s249, %s250
    %p262 = scmp.eq.s32.totalorder %s23, 1
    %p263 = por %p261, %p262
    %p265 = scmp.ne.s32.totalorder %s250, %s264
    %p266 = scmp.eq.s32.totalorder %s23, 0
    %p267 = por %p265, %p266
    %s269 = sadd.s32 %s268, 1
    %p272 = scmp.eq.s32.totalorder %s17, 1
    %p273 = scmp.ne.s32.totalorder %s268, %s270
    %p274 = scmp.eq.s32.totalorder %s17, 0
    %p275 = por %p273, %p274
    %p276 = scmp.ne.s32.totalorder %s268, %s270
    %p277 = scmp.eq.s32.totalorder %s22, 1
    %p278 = por %p276, %p277
    %p279 = scmp.ne.s32.totalorder %s270, %s271
    %p280 = scmp.eq.s32.totalorder %s22, 0
    %p281 = por %p279, %p280
    %p282 = scmp.ne.s32.totalorder %s270, %s271
    %p283 = scmp.eq.s32.totalorder %s23, 1
    %p284 = por %p282, %p283
    %p286 = scmp.ne.s32.totalorder %s271, %s285
    %p287 = scmp.eq.s32.totalorder %s23, 0
    %p288 = por %p286, %p287
    %s289 = ssub.s32 %s24, %s36
    %s290 = ssub.s32 %s25, %s32
    %s291 = sor.u32 %s289, %s290
    %p292 = scmp.eq.s32.totalorder %s291, 0
    %s294 = sadd.s32 %s293, 1
    %s295 = scalar_select %p292, %s293, %s294
    %p298 = pneg %p292
    %p299 = scmp.eq.s32.totalorder %s17, 1
    %p300 = por %p298, %p299
    %p301 = scmp.ne.s32.totalorder %s293, %s296
    %p302 = scmp.eq.s32.totalorder %s17, 0
    %p303 = por %p301, %p302
    %p304 = scmp.ne.s32.totalorder %s293, %s296
    %p305 = scmp.eq.s32.totalorder %s22, 1
    %p306 = por %p304, %p305
    %p307 = scmp.ne.s32.totalorder %s296, %s297
    %p308 = scmp.eq.s32.totalorder %s22, 0
    %p309 = por %p307, %p308
    %p310 = scmp.ne.s32.totalorder %s296, %s297
    %p311 = scmp.eq.s32.totalorder %s23, 1
    %p312 = por %p310, %p311
    %p314 = scmp.ne.s32.totalorder %s297, %s313
    %p315 = scmp.eq.s32.totalorder %s23, 0
    %p316 = por %p314, %p315
    %p317 = scmp.le.s32.totalorder 1, %s17
    %p318 = scmp.lt.s32.totalorder %s17, 3
    %p319 = pnand %p317, %p318
    %p320 = pneg %p319
    // Predicated region
    $region9: #{tpu_custom_call.1} parent=5 // pred_check
      _
    $region10: #{tpu_custom_call.1} parent=5 // pred_check_branch
      %322 = sbr.rel (%p319) target = $region12
    $region11: #{tpu_custom_call.1} parent=5 // pred_region
      %s323 = ssub.s32 %s17, 1
      // Predicated region
      $region13: #{tpu_custom_call.1} parent=11 // pred_check
        %p324 = pneg %p134
      $region14: #{tpu_custom_call.1} parent=11 // pred_check_branch
        %326 = sbr.rel (%p324) target = $region16
      $region15: #{tpu_custom_call.1} parent=11 // pred_region
        _
      $region16: #{tpu_custom_call.1} parent=11 // pred_fallthru
        _
      // Predicated region
      $region17: #{tpu_custom_call.1} parent=11 // pred_check
        %p327 = pneg %p155
      $region18: #{tpu_custom_call.1} parent=11 // pred_check_branch
        %329 = sbr.rel (%p327) target = $region20
      $region19: #{tpu_custom_call.1} parent=11 // pred_region
        _
      $region20: #{tpu_custom_call.1} parent=11 // pred_fallthru
        _
      // Predicated region
      $region21: #{tpu_custom_call.1} parent=11 // pred_check
        %p330 = pneg %p176
      $region22: #{tpu_custom_call.1} parent=11 // pred_check_branch
        %332 = sbr.rel (%p330) target = $region24
      $region23: #{tpu_custom_call.1} parent=11 // pred_region
        _
      $region24: #{tpu_custom_call.1} parent=11 // pred_fallthru
        _
      // Predicated region
      $region25: #{tpu_custom_call.1} parent=11 // pred_check
        %p333 = pneg %p197
      $region26: #{tpu_custom_call.1} parent=11 // pred_check_branch
        %335 = sbr.rel (%p333) target = $region28
      $region27: #{tpu_custom_call.1} parent=11 // pred_region
        _
      $region28: #{tpu_custom_call.1} parent=11 // pred_fallthru
        _
      // Predicated region
      $region29: #{tpu_custom_call.1} parent=11 // pred_check
        %p336 = pneg %p218
      $region30: #{tpu_custom_call.1} parent=11 // pred_check_branch
        %338 = sbr.rel (%p336) target = $region32
      $region31: #{tpu_custom_call.1} parent=11 // pred_region
        _
      $region32: #{tpu_custom_call.1} parent=11 // pred_fallthru
        _
      // Predicated region
      $region33: #{tpu_custom_call.1} parent=11 // pred_check
        %p339 = pneg %p239
      $region34: #{tpu_custom_call.1} parent=11 // pred_check_branch
        %341 = sbr.rel (%p339) target = $region36
      $region35: #{tpu_custom_call.1} parent=11 // pred_region
        _
      $region36: #{tpu_custom_call.1} parent=11 // pred_fallthru
        _
      // Predicated region
      $region37: #{tpu_custom_call.1} parent=11 // pred_check
        %p342 = pneg %p260
      $region38: #{tpu_custom_call.1} parent=11 // pred_check_branch
        %344 = sbr.rel (%p342) target = $region40
      $region39: #{tpu_custom_call.1} parent=11 // pred_region
        _
      $region40: #{tpu_custom_call.1} parent=11 // pred_fallthru
        _
      // Predicated region
      $region41: #{tpu_custom_call.1} parent=11 // pred_check
        %p345 = pneg %p281
      $region42: #{tpu_custom_call.1} parent=11 // pred_check_branch
        %347 = sbr.rel (%p345) target = $region44
      $region43: #{tpu_custom_call.1} parent=11 // pred_region
        _
      $region44: #{tpu_custom_call.1} parent=11 // pred_fallthru
        _
    $region12: #{tpu_custom_call.1} parent=5 // pred_fallthru
      _
    %p348 = scmp.lt.s32.totalorder %s17, 2
    // Predicated region
    $region45: #{tpu_custom_call.1} parent=5 // pred_check
      %p349 = pneg %p348
    $region46: #{tpu_custom_call.1} parent=5 // pred_check_branch
      %351 = sbr.rel (%p349) target = $region48
    $region47: #{tpu_custom_call.1} parent=5 // pred_region
      // Predicated region
      $region49: #{tpu_custom_call.1} parent=47 // pred_check
        %p352 = pneg %p51
      $region50: #{tpu_custom_call.1} parent=47 // pred_check_branch
        %354 = sbr.rel (%p352) target = $region52
      $region51: #{tpu_custom_call.1} parent=47 // pred_region
        %p355 = scmp.lt.s32.totalorder %s24, 1
        %s356 = scalar_select %p355, %s24, 1
        %p357 = scmp.lt.s32.totalorder %s25, 0
        %s358 = scalar_select %p357, %s25, 0
        %s359 = smul.addr %s356, 2
        %s360 = sadd.s32 %s358, %s359
        %s361 = smul.addr %s360, 4
        %s362 = scalar_lea.vmem %s0, %s361
      $region52: #{tpu_custom_call.1} parent=47 // pred_fallthru
        _
      // Predicated region
      $region53: #{tpu_custom_call.1} parent=47 // pred_check
        %p363 = pneg %p79
      $region54: #{tpu_custom_call.1} parent=47 // pred_check_branch
        %365 = sbr.rel (%p363) target = $region56
      $region55: #{tpu_custom_call.1} parent=47 // pred_region
        %p366 = scmp.lt.s32.totalorder %s24, 1
        %s367 = scalar_select %p366, %s24, 1
        %p368 = scmp.lt.s32.totalorder %s25, 0
        %s369 = scalar_select %p368, %s25, 0
        %s370 = smul.addr %s367, 2
        %s371 = sadd.s32 %s369, %s370
        %s372 = smul.addr %s371, 4
        %s373 = scalar_lea.vmem %s1, %s372
      $region56: #{tpu_custom_call.1} parent=47 // pred_fallthru
        _
      // Predicated region
      $region57: #{tpu_custom_call.1} parent=47 // pred_check
        %p374 = pneg %p107
      $region58: #{tpu_custom_call.1} parent=47 // pred_check_branch
        %376 = sbr.rel (%p374) target = $region60
      $region59: #{tpu_custom_call.1} parent=47 // pred_region
        %p377 = scmp.lt.s32.totalorder %s24, 1
        %s378 = scalar_select %p377, %s24, 1
        %p379 = scmp.lt.s32.totalorder %s25, 0
        %s380 = scalar_select %p379, %s25, 0
        %s381 = sadd.s32 %s380, %s378
        %s382 = smul.addr %s381, 2
        %s383 = scalar_lea.vmem %s2, %s382
      $region60: #{tpu_custom_call.1} parent=47 // pred_fallthru
        _
    $region48: #{tpu_custom_call.1} parent=5 // pred_fallthru
      _
    %p384 = scmp.le.s32.totalorder 1, %s17
    %p385 = scmp.lt.s32.totalorder %s17, 3
    %p386 = pnand %p384, %p385
    %p387 = pneg %p386
    // Predicated region
    $region61: #{tpu_custom_call.1} parent=5 // pred_check
      _
    $region62: #{tpu_custom_call.1} parent=5 // pred_check_branch
      %389 = sbr.rel (%p386) target = $region64
    $region63: #{tpu_custom_call.1} parent=5 // pred_region
      %s390 = ssub.s32 %s17, 1
      %p391 = scmp.lt.s32.totalorder %s26, 1
      %s392 = scalar_select %p391, %s26, 1
      %p393 = scmp.lt.s32.totalorder %s27, 0
      %s394 = scalar_select %p393, %s27, 0
      %s395 = smul.addr %s392, 2
      %s396 = sadd.s32 %s394, %s395
      %s397 = smul.addr %s396, 4
      %s398 = scalar_lea.vmem %s0, %s397
      %p399 = pneg %p57
      %p400 = pneg %p54
      %p401 = scmp.lt.s32.totalorder %s26, 1
      %s402 = scalar_select %p401, %s26, 1
      %p403 = scmp.lt.s32.totalorder %s27, 0
      %s404 = scalar_select %p403, %s27, 0
      %s405 = smul.addr %s402, 2
      %s406 = sadd.s32 %s404, %s405
      %s407 = smul.addr %s406, 4
      %s408 = scalar_lea.vmem %s1, %s407
      %p409 = pneg %p85
      %p410 = pneg %p82
      %p411 = scmp.lt.s32.totalorder %s26, 1
      %s412 = scalar_select %p411, %s26, 1
      %p413 = scmp.lt.s32.totalorder %s27, 0
      %s414 = scalar_select %p413, %s27, 0
      %s415 = sadd.s32 %s414, %s412
      %s416 = smul.addr %s415, 2
      %s417 = scalar_lea.vmem %s2, %s416
      %p418 = pneg %p113
      %p419 = pneg %p110
      %p420 = pneg %p134
      %p421 = pneg %p131
      %p422 = pneg %p155
      %p423 = pneg %p152
      %p424 = pneg %p176
      %p425 = pneg %p173
      %p426 = pneg %p197
      %p427 = pneg %p194
      %p428 = pneg %p218
      %p429 = pneg %p215
      %p430 = pneg %p239
      %p431 = pneg %p236
      %p432 = pneg %p260
      %p433 = pneg %p257
      %p434 = pneg %p281
      %p435 = pneg %p278
      %p436 = pneg %p309
      %p437 = pneg %p306
      %p438 = scmp.lt.s32.totalorder %s26, 1
      %s439 = scalar_select %p438, %s26, 1
      %p440 = scmp.lt.s32.totalorder %s27, 0
      %s441 = scalar_select %p440, %s27, 0
      %s442 = sadd.s32 %s441, %s439
      %s443 = scalar_lea.vmem %s11, %s442
      %p444 = scmp.lt.s32.totalorder %s26, 1
      %s445 = scalar_select %p444, %s26, 1
      %p446 = scmp.lt.s32.totalorder %s27, 0
      %s447 = scalar_select %p446, %s27, 0
      %s448 = smul.addr %s445, 2
      %s449 = sadd.s32 %s447, %s448
      %s450 = smul.addr %s449, 4
      %s451 = scalar_lea.vmem %s0, %s450
      %p452 = scmp.lt.s32.totalorder %s26, 1
      %s453 = scalar_select %p452, %s26, 1
      %p454 = scmp.lt.s32.totalorder %s27, 0
      %s455 = scalar_select %p454, %s27, 0
      %s456 = smul.addr %s453, 2
      %s457 = sadd.s32 %s455, %s456
      %s458 = smul.addr %s457, 4
      %s459 = scalar_lea.vmem %s1, %s458
      %p460 = scmp.lt.s32.totalorder %s26, 1
      %s461 = scalar_select %p460, %s26, 1
      %p462 = scmp.lt.s32.totalorder %s27, 0
      %s463 = scalar_select %p462, %s27, 0
      %s464 = sadd.s32 %s463, %s461
      %s465 = smul.addr %s464, 2
      %s466 = scalar_lea.vmem %s2, %s465
      %p467 = scmp.lt.s32.totalorder %s26, 1
      %s468 = scalar_select %p467, %s26, 1
      %p469 = scmp.lt.s32.totalorder %s27, 0
      %s470 = scalar_select %p469, %s27, 0
      %s471 = sadd.s32 %s470, %s468
      %s472 = scalar_lea.vmem %s11, %s471
      %v473 = vld [vmem:[%s451] sm:$0xf]
      %v474 = vld [vmem:[%s451 + $0x4] sm:$0x3]
      %v475 = vunpack.c.l.bf16 %v473
      %v476 = vunpack.c.l.bf16 %v474
      %v477 = vld [vmem:[%s459] sm:$0xf]
      %v478 = vld [vmem:[%s459 + $0x4] sm:$0x3]
      %v479 = vunpack.c.l.bf16 %v477
      %v480 = vunpack.c.l.bf16 %v478
      %v481 = vld [vmem:[%s3] sm:$0xff]
      %v482 = vld [vmem:[%s3 + $0x8] sm:$0xff]
      %v483 = vld [vmem:[%s3 + $0x10] sm:$0xff]
      %v484 = vld [vmem:[%s3 + $0x18] sm:$0xff]
      %v485 = vld [vmem:[%s4] sm:$0xff]
      %v486 = vld [vmem:[%s4 + $0x8] sm:$0xff]
      %v487 = vld [vmem:[%s4 + $0x10] sm:$0xff]
      %v488 = vld [vmem:[%s4 + $0x18] sm:$0xff]
      %vm489 = vcmask 97280
      %v491 = vsel %vm489, %v485, 0
      %v494 = vsel %vm489, %v486, 0
      %v497 = vsel %vm489, %v487, 0
      %v500 = vsel %vm489, %v488, 0
      %vm502 = vcmask 1043456
      %v504 = vsel %vm502, %v480, 0
      %506 = vmatprep.subr.mxu0 0.0
      %507 = vmatpush1.msra.mxu0 %v479
      %508 = vmatprep.subr.mxu0 0.0
      %509 = vmatpush1.msra.mxu0 %v504
      %510 = vmatprep.subr.mxu0 0.0
      %511 = vmatpush1.msra.mxu0 0.0
      %512 = vmatprep.subr.mxu0 0.0
      %513 = vmatpush1.msra.mxu0 0.0
      %514 = vmatprep.subr.mxu0 0.0
      %515 = vmatpush1.msra.mxu0 0.0
      %516 = vmatprep.subr.mxu0 0.0
      %517 = vmatpush1.msra.mxu0 0.0
      %518 = vmatprep.subr.mxu0 0.0
      %519 = vmatpush1.msra.mxu0 0.0
      %520 = vmatprep.subr.mxu0 0.0
      %521 = vmatpush1.msra.mxu0 0.0
      %522 = vmatprep.subr.mxu0 0.0
      %523 = vmatpush1.msra.mxu0 0.0
      %524 = vmatprep.subr.mxu0 0.0
      %525 = vmatpush1.msra.mxu0 0.0
      %526 = vmatprep.subr.mxu0 0.0
      %527 = vmatpush1.msra.mxu0 0.0
      %528 = vmatprep.subr.mxu0 0.0
      %529 = vmatpush1.msra.mxu0 0.0
      %530 = vmatprep.subr.mxu0 0.0
      %531 = vmatpush1.msra.mxu0 0.0
      %532 = vmatprep.subr.mxu0 0.0
      %533 = vmatpush1.msra.mxu0 0.0
      %534 = vmatprep.subr.mxu0 0.0
      %535 = vmatpush1.msra.mxu0 0.0
      %536 = vmatprep.subr.mxu0 0.0
      %537 = vmatpush1.msra.mxu0 0.0
      %538 = vmatprep.subr.mxu0 0.0
      %539 = vmatpush1.msra.mxu0 0.0
      %540 = vmatprep.subr.mxu0 0.0
      %541 = vmatpush1.msra.mxu0 0.0
      %542 = vmatprep.subr.mxu0 0.0
      %543 = vmatpush1.msra.mxu0 0.0
      %544 = vmatprep.subr.mxu0 0.0
      %545 = vmatpush1.msra.mxu0 0.0
      %546 = vmatprep.subr.mxu0 0.0
      %547 = vmatpush1.msra.mxu0 0.0
      %548 = vmatprep.subr.mxu0 0.0
      %549 = vmatpush1.msra.mxu0 0.0
      %550 = vmatprep.subr.mxu0 0.0
      %551 = vmatpush1.msra.mxu0 0.0
      %552 = vmatprep.subr.mxu0 0.0
      %553 = vmatpush1.msra.mxu0 0.0
      %554 = vmatprep.subr.mxu0 0.0
      %555 = vmatpush1.msra.mxu0 0.0
      %556 = vmatprep.subr.mxu0 0.0
      %557 = vmatpush1.msra.mxu0 0.0
      %558 = vmatprep.subr.mxu0 0.0
      %559 = vmatpush1.msra.mxu0 0.0
      %560 = vmatprep.subr.mxu0 0.0
      %561 = vmatpush1.msra.mxu0 0.0
      %562 = vmatprep.subr.mxu0 0.0
      %563 = vmatpush1.msra.mxu0 0.0
      %564 = vmatprep.subr.mxu0 0.0
      %565 = vmatpush1.msra.mxu0 0.0
      %566 = vmatprep.subr.mxu0 0.0
      %567 = vmatpush1.msra.mxu0 0.0
      %568 = vmatprep.subr.mxu0 0.0
      %569 = vmatpush1.msra.mxu0 0.0
      %570 = vmatprep.mubr.f32.mxu0 0.0
      %571 = vmatmul.mubr.f32.gmra.mrb[0].mxu0 %v491
      %v572 = vpop.f32.mrb[0].mxu0
      %v573 = vadd.f32 0.0, %v572
      %v574 = vpop.f32.mrb[0].mxu0
      %575 = vmatprep.mubr.f32.mxu0 0.0
      %576 = vmatmul.mubr.f32.gmra.mrb[0].mxu0 %v494
      %v577 = vpop.f32.mrb[0].mxu0
      %v578 = vadd.f32 0.0, %v577
      %v579 = vpop.f32.mrb[0].mxu0
      %580 = vmatprep.mubr.f32.mxu0 0.0
      %581 = vmatmul.mubr.f32.gmra.mrb[0].mxu0 %v497
      %v582 = vpop.f32.mrb[0].mxu0
      %v583 = vadd.f32 0.0, %v582
      %v584 = vpop.f32.mrb[0].mxu0
      %585 = vmatprep.mubr.f32.mxu0 0.0
      %586 = vmatmul.mubr.f32.gmra.mrb[0].mxu0 %v500
      %v587 = vpop.f32.mrb[0].mxu0
      %v588 = vadd.f32 0.0, %v587
      %v589 = vpop.f32.mrb[0].mxu0
      %590 = vdwg.mxu0
      %v592 = vsel %vm489, %v481, 0
      %v595 = vsel %vm489, %v482, 0
      %v598 = vsel %vm489, %v483, 0
      %v601 = vsel %vm489, %v484, 0
      %v604 = vsel %vm502, %v476, 0
      %606 = vmatprep.subr.mxu0 0.0
      %607 = vmatpush1.msra.mxu0 %v475
      %608 = vmatprep.subr.mxu0 0.0
      %609 = vmatpush1.msra.mxu0 %v604
      %610 = vmatprep.subr.mxu0 0.0
      %611 = vmatpush1.msra.mxu0 0.0
      %612 = vmatprep.subr.mxu0 0.0
      %613 = vmatpush1.msra.mxu0 0.0
      %614 = vmatprep.subr.mxu0 0.0
      %615 = vmatpush1.msra.mxu0 0.0
      %616 = vmatprep.subr.mxu0 0.0
      %617 = vmatpush1.msra.mxu0 0.0
      %618 = vmatprep.subr.mxu0 0.0
      %619 = vmatpush1.msra.mxu0 0.0
      %620 = vmatprep.subr.mxu0 0.0
      %621 = vmatpush1.msra.mxu0 0.0
      %622 = vmatprep.subr.mxu0 0.0
      %623 = vmatpush1.msra.mxu0 0.0
      %624 = vmatprep.subr.mxu0 0.0
      %625 = vmatpush1.msra.mxu0 0.0
      %626 = vmatprep.subr.mxu0 0.0
      %627 = vmatpush1.msra.mxu0 0.0
      %628 = vmatprep.subr.mxu0 0.0
      %629 = vmatpush1.msra.mxu0 0.0
      %630 = vmatprep.subr.mxu0 0.0
      %631 = vmatpush1.msra.mxu0 0.0
      %632 = vmatprep.subr.mxu0 0.0
      %633 = vmatpush1.msra.mxu0 0.0
      %634 = vmatprep.subr.mxu0 0.0
      %635 = vmatpush1.msra.mxu0 0.0
      %636 = vmatprep.subr.mxu0 0.0
      %637 = vmatpush1.msra.mxu0 0.0
      %638 = vmatprep.subr.mxu0 0.0
      %639 = vmatpush1.msra.mxu0 0.0
      %640 = vmatprep.subr.mxu0 0.0
      %641 = vmatpush1.msra.mxu0 0.0
      %642 = vmatprep.subr.mxu0 0.0
      %643 = vmatpush1.msra.mxu0 0.0
      %644 = vmatprep.subr.mxu0 0.0
      %645 = vmatpush1.msra.mxu0 0.0
      %646 = vmatprep.subr.mxu0 0.0
      %647 = vmatpush1.msra.mxu0 0.0
      %648 = vmatprep.subr.mxu0 0.0
      %649 = vmatpush1.msra.mxu0 0.0
      %650 = vmatprep.subr.mxu0 0.0
      %651 = vmatpush1.msra.mxu0 0.0
      %652 = vmatprep.subr.mxu0 0.0
      %653 = vmatpush1.msra.mxu0 0.0
      %654 = vmatprep.subr.mxu0 0.0
      %655 = vmatpush1.msra.mxu0 0.0
      %656 = vmatprep.subr.mxu0 0.0
      %657 = vmatpush1.msra.mxu0 0.0
      %658 = vmatprep.subr.mxu0 0.0
      %659 = vmatpush1.msra.mxu0 0.0
      %660 = vmatprep.subr.mxu0 0.0
      %661 = vmatpush1.msra.mxu0 0.0
      %662 = vmatprep.subr.mxu0 0.0
      %663 = vmatpush1.msra.mxu0 0.0
      %664 = vmatprep.subr.mxu0 0.0
      %665 = vmatpush1.msra.mxu0 0.0
      %666 = vmatprep.subr.mxu0 0.0
      %667 = vmatpush1.msra.mxu0 0.0
      %668 = vmatprep.subr.mxu0 0.0
      %669 = vmatpush1.msra.mxu0 0.0
      %670 = vmatprep.mubr.f32.mxu0 0.0
      %671 = vmatmul.mubr.f32.gmra.mrb[0].mxu0 %v592
      %v672 = vpop.f32.mrb[0].mxu0
      %v673 = vadd.f32 %v573, %v672
      %v674 = vpop.f32.mrb[0].mxu0
      %675 = vmatprep.mubr.f32.mxu0 0.0
      %676 = vmatmul.mubr.f32.gmra.mrb[0].mxu0 %v595
      %v677 = vpop.f32.mrb[0].mxu0
      %v678 = vadd.f32 %v578, %v677
      %v679 = vpop.f32.mrb[0].mxu0
      %680 = vmatprep.mubr.f32.mxu0 0.0
      %681 = vmatmul.mubr.f32.gmra.mrb[0].mxu0 %v598
      %v682 = vpop.f32.mrb[0].mxu0
      %v683 = vadd.f32 %v583, %v682
      %v684 = vpop.f32.mrb[0].mxu0
      %685 = vmatprep.mubr.f32.mxu0 0.0
      %686 = vmatmul.mubr.f32.gmra.mrb[0].mxu0 %v601
      %v687 = vpop.f32.mrb[0].mxu0
      %v688 = vadd.f32 %v588, %v687
      %v689 = vpop.f32.mrb[0].mxu0
      %690 = vdwg.mxu0
      %v691 = vld [vmem:[%s5] sm:$0xff]
      %v692 = vld [vmem:[%s5 + $0x8] sm:$0xff]
      %v693 = vld [vmem:[%s5 + $0x10] sm:$0xff]
      %v694 = vld [vmem:[%s5 + $0x18] sm:$0xff]
      %696 = vset.pattern.permute.xlu0 0
      %697 = vperm.xlu0 %696, %v691
      %v698 = vpop.permute.xlu0 %697
      %701 = vset.pattern.permute.xlu0 0
      %702 = vperm.xlu0 %701, %v692
      %v703 = vpop.permute.xlu0 %702
      %706 = vset.pattern.permute.xlu0 0
      %707 = vperm.xlu0 %706, %v693
      %v708 = vpop.permute.xlu0 %707
      %711 = vset.pattern.permute.xlu0 0
      %712 = vperm.xlu0 %711, %v694
      %v713 = vpop.permute.xlu0 %712
      %v715 = vadd.f32 %v673, %v698
      %v716 = vadd.f32 %v678, %v703
      %v717 = vadd.f32 %v683, %v708
      %v718 = vadd.f32 %v688, %v713
      %v719 = vmax.f32 %v715, 0.0
      %v720 = vmax.f32 %v716, 0.0
      %v721 = vmax.f32 %v717, 0.0
      %v722 = vmax.f32 %v718, 0.0
      %v723 = vld [vmem:[%s466] sm:$0x3]
      %v724 = vlaneseq
      %v725 = vshrl.u32 %v724, 7
      %v726 = vadd.s32 %v725, 8
      %v727 = vlaneseq
      %v728 = vshrl.u32 %v727, 7
      %v729 = vsub.s32 0, %v728
      %v730 = vrot.slane %v723, %v729
      %vm731 = vcmp.eq.s32.totalorder %v725, %v730
      %vm732 = vcmp.eq.s32.totalorder %v726, %v730
      %v733 = vsel %vm731, 1, 0
      %v734 = vsel %vm732, 1, 0
      %v735 = vcvt.s32.f32 %v733
      %v736 = vcvt.s32.f32 %v734
      %v737 = vlaneseq
      %v738 = vshrl.u32 %v737, 7
      %v739 = vsub.s32 1, %v738
      %v740 = vrot.slane %v723, %v739
      %vm741 = vcmp.eq.s32.totalorder %v725, %v740
      %v742 = vsel %vm741, 1, 0
      %v743 = vcvt.s32.f32 %v742
      %v744 = vld [vmem:[%s6] sm:$0xff]
      %v745 = vld [vmem:[%s6 + $0x8] sm:$0xf]
      %v746 = vld [vmem:[%s7] sm:$0xff]
      %v747 = vld [vmem:[%s7 + $0x8] sm:$0xf]
      %749 = vset.pattern.permute.xlu0 0
      %750 = vperm.xlu0 %749, %v746
      %v751 = vpop.permute.xlu0 %750
      %754 = vset.pattern.permute.xlu0 0
      %755 = vperm.xlu0 %754, %v747
      %v756 = vpop.permute.xlu0 %755
      %vm758 = vcmask 261120
      %v760 = vsel %vm758, %v744, 0
      %v763 = vsel %vm758, %v745, 0
      %765 = vmatprep.subr.mxu0 0.0
      %766 = vmatpush1.msra.mxu0 %v719
      %767 = vmatprep.subr.mxu0 0.0
      %768 = vmatpush1.msra.mxu0 %v720
      %769 = vmatprep.subr.mxu0 0.0
      %770 = vmatpush1.msra.mxu0 %v721
      %771 = vmatprep.subr.mxu0 0.0
      %772 = vmatpush1.msra.mxu0 %v722
      %773 = vmatprep.subr.mxu0 0.0
      %774 = vmatpush1.msra.mxu0 0.0
      %775 = vmatprep.subr.mxu0 0.0
      %776 = vmatpush1.msra.mxu0 0.0
      %777 = vmatprep.subr.mxu0 0.0
      %778 = vmatpush1.msra.mxu0 0.0
      %779 = vmatprep.subr.mxu0 0.0
      %780 = vmatpush1.msra.mxu0 0.0
      %781 = vmatprep.subr.mxu0 0.0
      %782 = vmatpush1.msra.mxu0 0.0
      %783 = vmatprep.subr.mxu0 0.0
      %784 = vmatpush1.msra.mxu0 0.0
      %785 = vmatprep.subr.mxu0 0.0
      %786 = vmatpush1.msra.mxu0 0.0
      %787 = vmatprep.subr.mxu0 0.0
      %788 = vmatpush1.msra.mxu0 0.0
      %789 = vmatprep.subr.mxu0 0.0
      %790 = vmatpush1.msra.mxu0 0.0
      %791 = vmatprep.subr.mxu0 0.0
      %792 = vmatpush1.msra.mxu0 0.0
      %793 = vmatprep.subr.mxu0 0.0
      %794 = vmatpush1.msra.mxu0 0.0
      %795 = vmatprep.subr.mxu0 0.0
      %796 = vmatpush1.msra.mxu0 0.0
      %797 = vmatprep.subr.mxu0 0.0
      %798 = vmatpush1.msra.mxu0 0.0
      %799 = vmatprep.subr.mxu0 0.0
      %800 = vmatpush1.msra.mxu0 0.0
      %801 = vmatprep.subr.mxu0 0.0
      %802 = vmatpush1.msra.mxu0 0.0
      %803 = vmatprep.subr.mxu0 0.0
      %804 = vmatpush1.msra.mxu0 0.0
      %805 = vmatprep.subr.mxu0 0.0
      %806 = vmatpush1.msra.mxu0 0.0
      %807 = vmatprep.subr.mxu0 0.0
      %808 = vmatpush1.msra.mxu0 0.0
      %809 = vmatprep.subr.mxu0 0.0
      %810 = vmatpush1.msra.mxu0 0.0
      %811 = vmatprep.subr.mxu0 0.0
      %812 = vmatpush1.msra.mxu0 0.0
      %813 = vmatprep.subr.mxu0 0.0
      %814 = vmatpush1.msra.mxu0 0.0
      %815 = vmatprep.subr.mxu0 0.0
      %816 = vmatpush1.msra.mxu0 0.0
      %817 = vmatprep.subr.mxu0 0.0
      %818 = vmatpush1.msra.mxu0 0.0
      %819 = vmatprep.subr.mxu0 0.0
      %820 = vmatpush1.msra.mxu0 0.0
      %821 = vmatprep.subr.mxu0 0.0
      %822 = vmatpush1.msra.mxu0 0.0
      %823 = vmatprep.subr.mxu0 0.0
      %824 = vmatpush1.msra.mxu0 0.0
      %825 = vmatprep.subr.mxu0 0.0
      %826 = vmatpush1.msra.mxu0 0.0
      %827 = vmatprep.subr.mxu0 0.0
      %828 = vmatpush1.msra.mxu0 0.0
      %829 = vmatprep.mubr.f32.mxu0 0.0
      %830 = vmatmul.mubr.f32.gmra.mrb[0].mxu0 %v760
      %v831 = vpop.f32.mrb[0].mxu0
      %v832 = vadd.f32 %v751, %v831
      %v833 = vpop.f32.mrb[0].mxu0
      %834 = vmatprep.mubr.f32.mxu0 0.0
      %835 = vmatmul.mubr.f32.gmra.mrb[0].mxu0 %v763
      %v836 = vpop.f32.mrb[0].mxu0
      %v837 = vadd.f32 %v756, %v836
      %v838 = vpop.f32.mrb[0].mxu0
      %839 = vdwg.mxu0
      %vm840 = vcmask 130048
      %v841 = vsel %vm840, %v832, -inf
      %vm842 = vcmask 125952
      %v843 = vsel %vm842, %v837, -inf
      %v844 = vmax.f32 %v841, %v843
      %v845 = vrot.slane %v844, 4
      %v846 = vmax.f32 %v844, %v845
      %v847 = vrot.slane %v846, 2
      %v848 = vmax.f32 %v846, %v847
      %v849 = vrot.slane %v848, 1
      %v850 = vmax.f32 %v848, %v849
      %v851 = vsub.f32 %v832, %v850
      %v852 = vsub.f32 %v837, %v850
      %v853 = vmul.f32 %v851, 1.442695
      %v854 = vpow.pop %v853
      %v855 = vmul.f32 %v852, 1.442695
      %v856 = vpow.pop %v855
      %v857 = vsel %vm840, %v854, 0.0
      %v858 = vsel %vm842, %v856, 0.0
      %v859 = vadd.f32 %v857, %v858
      %v860 = vrot.slane %v859, 4
      %v861 = vadd.f32 %v859, %v860
      %v862 = vrot.slane %v861, 2
      %v863 = vadd.f32 %v861, %v862
      %v864 = vrot.slane %v863, 1
      %v865 = vadd.f32 %v863, %v864
      %v866 = vlog2.pop %v865
      %v867 = vmul.f32 %v866, 0.6931472
      %v868 = vadd.f32 %v850, %v867
      %v869 = vmul.f32 %v735, %v832
      %v870 = vmul.f32 %v736, %v837
      %v871 = vsel %vm840, %v869, 0.0
      %v872 = vsel %vm842, %v870, 0.0
      %v873 = vadd.f32 %v871, %v872
      %v874 = vrot.slane %v873, 4
      %v875 = vadd.f32 %v873, %v874
      %v876 = vrot.slane %v875, 2
      %v877 = vadd.f32 %v875, %v876
      %v878 = vrot.slane %v877, 1
      %v879 = vadd.f32 %v877, %v878
      %v880 = vld [vmem:[%s8] sm:$0xff]
      %v881 = vld [vmem:[%s8 + $0x8] sm:$0xff]
      %v882 = vld [vmem:[%s8 + $0x10] sm:$0xff]
      %v883 = vld [vmem:[%s8 + $0x18] sm:$0xff]
      %v885 = vsel %vm489, %v880, 0
      %v888 = vsel %vm489, %v881, 0
      %v891 = vsel %vm489, %v882, 0
      %v894 = vsel %vm489, %v883, 0
      %v897 = vsel %vm502, %v736, 0
      %899 = vmatprep.subr.mxu0 0.0
      %900 = vmatpush1.msra.mxu0 %v735
      %901 = vmatprep.subr.mxu0 0.0
      %902 = vmatpush1.msra.mxu0 %v897
      %903 = vmatprep.subr.mxu0 0.0
      %904 = vmatpush1.msra.mxu0 0.0
      %905 = vmatprep.subr.mxu0 0.0
      %906 = vmatpush1.msra.mxu0 0.0
      %907 = vmatprep.subr.mxu0 0.0
      %908 = vmatpush1.msra.mxu0 0.0
      %909 = vmatprep.subr.mxu0 0.0
      %910 = vmatpush1.msra.mxu0 0.0
      %911 = vmatprep.subr.mxu0 0.0
      %912 = vmatpush1.msra.mxu0 0.0
      %913 = vmatprep.subr.mxu0 0.0
      %914 = vmatpush1.msra.mxu0 0.0
      %915 = vmatprep.subr.mxu0 0.0
      %916 = vmatpush1.msra.mxu0 0.0
      %917 = vmatprep.subr.mxu0 0.0
      %918 = vmatpush1.msra.mxu0 0.0
      %919 = vmatprep.subr.mxu0 0.0
      %920 = vmatpush1.msra.mxu0 0.0
      %921 = vmatprep.subr.mxu0 0.0
      %922 = vmatpush1.msra.mxu0 0.0
      %923 = vmatprep.subr.mxu0 0.0
      %924 = vmatpush1.msra.mxu0 0.0
      %925 = vmatprep.subr.mxu0 0.0
      %926 = vmatpush1.msra.mxu0 0.0
      %927 = vmatprep.subr.mxu0 0.0
      %928 = vmatpush1.msra.mxu0 0.0
      %929 = vmatprep.subr.mxu0 0.0
      %930 = vmatpush1.msra.mxu0 0.0
      %931 = vmatprep.subr.mxu0 0.0
      %932 = vmatpush1.msra.mxu0 0.0
      %933 = vmatprep.subr.mxu0 0.0
      %934 = vmatpush1.msra.mxu0 0.0
      %935 = vmatprep.subr.mxu0 0.0
      %936 = vmatpush1.msra.mxu0 0.0
      %937 = vmatprep.subr.mxu0 0.0
      %938 = vmatpush1.msra.mxu0 0.0
      %939 = vmatprep.subr.mxu0 0.0
      %940 = vmatpush1.msra.mxu0 0.0
      %941 = vmatprep.subr.mxu0 0.0
      %942 = vmatpush1.msra.mxu0 0.0
      %943 = vmatprep.subr.mxu0 0.0
      %944 = vmatpush1.msra.mxu0 0.0
      %945 = vmatprep.subr.mxu0 0.0
      %946 = vmatpush1.msra.mxu0 0.0
      %947 = vmatprep.subr.mxu0 0.0
      %948 = vmatpush1.msra.mxu0 0.0
      %949 = vmatprep.subr.mxu0 0.0
      %950 = vmatpush1.msra.mxu0 0.0
      %951 = vmatprep.subr.mxu0 0.0
      %952 = vmatpush1.msra.mxu0 0.0
      %953 = vmatprep.subr.mxu0 0.0
      %954 = vmatpush1.msra.mxu0 0.0
      %955 = vmatprep.subr.mxu0 0.0
      %956 = vmatpush1.msra.mxu0 0.0
      %957 = vmatprep.subr.mxu0 0.0
      %958 = vmatpush1.msra.mxu0 0.0
      %959 = vmatprep.subr.mxu0 0.0
      %960 = vmatpush1.msra.mxu0 0.0
      %961 = vmatprep.subr.mxu0 0.0
      %962 = vmatpush1.msra.mxu0 0.0
      %963 = vmatprep.mubr.f32.mxu0 0.0
      %964 = vmatmul.mubr.f32.gmra.mrb[0].mxu0 %v885
      %v965 = vpop.f32.mrb[0].mxu0
      %v966 = vadd.f32 0.0, %v965
      %v967 = vpop.f32.mrb[0].mxu0
      %968 = vmatprep.mubr.f32.mxu0 0.0
      %969 = vmatmul.mubr.f32.gmra.mrb[0].mxu0 %v888
      %v970 = vpop.f32.mrb[0].mxu0
      %v971 = vadd.f32 0.0, %v970
      %v972 = vpop.f32.mrb[0].mxu0
      %973 = vmatprep.mubr.f32.mxu0 0.0
      %974 = vmatmul.mubr.f32.gmra.mrb[0].mxu0 %v891
      %v975 = vpop.f32.mrb[0].mxu0
      %v976 = vadd.f32 0.0, %v975
      %v977 = vpop.f32.mrb[0].mxu0
      %978 = vmatprep.mubr.f32.mxu0 0.0
      %979 = vmatmul.mubr.f32.gmra.mrb[0].mxu0 %v894
      %v980 = vpop.f32.mrb[0].mxu0
      %v981 = vadd.f32 0.0, %v980
      %v982 = vpop.f32.mrb[0].mxu0
      %983 = vdwg.mxu0
      %v984 = vadd.f32 %v719, %v966
      %v985 = vadd.f32 %v720, %v971
      %v986 = vadd.f32 %v721, %v976
      %v987 = vadd.f32 %v722, %v981
      %v988 = vmax.f32 %v984, 0.0
      %v989 = vmax.f32 %v985, 0.0
      %v990 = vmax.f32 %v986, 0.0
      %v991 = vmax.f32 %v987, 0.0
      %v992 = vld [vmem:[%s9] sm:$0xf]
      %v993 = vld [vmem:[%s10] sm:$0xf]
      %995 = vset.pattern.permute.xlu0 0
      %996 = vperm.xlu0 %995, %v993
      %v997 = vpop.permute.xlu0 %996
      %v1000 = vsel %vm758, %v992, 0
      %1002 = vmatprep.subr.mxu0 0.0
      %1003 = vmatpush1.msra.mxu0 %v988
      %1004 = vmatprep.subr.mxu0 0.0
      %1005 = vmatpush1.msra.mxu0 %v989
      %1006 = vmatprep.subr.mxu0 0.0
      %1007 = vmatpush1.msra.mxu0 %v990
      %1008 = vmatprep.subr.mxu0 0.0
      %1009 = vmatpush1.msra.mxu0 %v991
      %1010 = vmatprep.subr.mxu0 0.0
      %1011 = vmatpush1.msra.mxu0 0.0
      %1012 = vmatprep.subr.mxu0 0.0
      %1013 = vmatpush1.msra.mxu0 0.0
      %1014 = vmatprep.subr.mxu0 0.0
      %1015 = vmatpush1.msra.mxu0 0.0
      %1016 = vmatprep.subr.mxu0 0.0
      %1017 = vmatpush1.msra.mxu0 0.0
      %1018 = vmatprep.subr.mxu0 0.0
      %1019 = vmatpush1.msra.mxu0 0.0
      %1020 = vmatprep.subr.mxu0 0.0
      %1021 = vmatpush1.msra.mxu0 0.0
      %1022 = vmatprep.subr.mxu0 0.0
      %1023 = vmatpush1.msra.mxu0 0.0
      %1024 = vmatprep.subr.mxu0 0.0
      %1025 = vmatpush1.msra.mxu0 0.0
      %1026 = vmatprep.subr.mxu0 0.0
      %1027 = vmatpush1.msra.mxu0 0.0
      %1028 = vmatprep.subr.mxu0 0.0
      %1029 = vmatpush1.msra.mxu0 0.0
      %1030 = vmatprep.subr.mxu0 0.0
      %1031 = vmatpush1.msra.mxu0 0.0
      %1032 = vmatprep.subr.mxu0 0.0
      %1033 = vmatpush1.msra.mxu0 0.0
      %1034 = vmatprep.subr.mxu0 0.0
      %1035 = vmatpush1.msra.mxu0 0.0
      %1036 = vmatprep.subr.mxu0 0.0
      %1037 = vmatpush1.msra.mxu0 0.0
      %1038 = vmatprep.subr.mxu0 0.0
      %1039 = vmatpush1.msra.mxu0 0.0
      %1040 = vmatprep.subr.mxu0 0.0
      %1041 = vmatpush1.msra.mxu0 0.0
      %1042 = vmatprep.subr.mxu0 0.0
      %1043 = vmatpush1.msra.mxu0 0.0
      %1044 = vmatprep.subr.mxu0 0.0
      %1045 = vmatpush1.msra.mxu0 0.0
      %1046 = vmatprep.subr.mxu0 0.0
      %1047 = vmatpush1.msra.mxu0 0.0
      %1048 = vmatprep.subr.mxu0 0.0
      %1049 = vmatpush1.msra.mxu0 0.0
      %1050 = vmatprep.subr.mxu0 0.0
      %1051 = vmatpush1.msra.mxu0 0.0
      %1052 = vmatprep.subr.mxu0 0.0
      %1053 = vmatpush1.msra.mxu0 0.0
      %1054 = vmatprep.subr.mxu0 0.0
      %1055 = vmatpush1.msra.mxu0 0.0
      %1056 = vmatprep.subr.mxu0 0.0
      %1057 = vmatpush1.msra.mxu0 0.0
      %1058 = vmatprep.subr.mxu0 0.0
      %1059 = vmatpush1.msra.mxu0 0.0
      %1060 = vmatprep.subr.mxu0 0.0
      %1061 = vmatpush1.msra.mxu0 0.0
      %1062 = vmatprep.subr.mxu0 0.0
      %1063 = vmatpush1.msra.mxu0 0.0
      %1064 = vmatprep.subr.mxu0 0.0
      %1065 = vmatpush1.msra.mxu0 0.0
      %1066 = vmatprep.mubr.f32.mxu0 0.0
      %1067 = vmatmul.mubr.f32.gmra.mrb[0].mxu0 %v1000
      %v1068 = vpop.f32.mrb[0].mxu0
      %v1069 = vadd.f32 %v997, %v1068
      %v1070 = vpop.f32.mrb[0].mxu0
      %1071 = vdwg.mxu0
      %v1072 = vsel %vm842, %v1069, -inf
      %v1073 = vrot.slane %v1072, 4
      %v1074 = vmax.f32 %v1072, %v1073
      %v1075 = vrot.slane %v1074, 2
      %v1076 = vmax.f32 %v1074, %v1075
      %v1077 = vrot.slane %v1076, 1
      %v1078 = vmax.f32 %v1076, %v1077
      %v1079 = vsub.f32 %v1069, %v1078
      %v1080 = vmul.f32 %v1079, 1.442695
      %v1081 = vpow.pop %v1080
      %v1082 = vsel %vm842, %v1081, 0.0
      %v1083 = vrot.slane %v1082, 4
      %v1084 = vadd.f32 %v1082, %v1083
      %v1085 = vrot.slane %v1084, 2
      %v1086 = vadd.f32 %v1084, %v1085
      %v1087 = vrot.slane %v1086, 1
      %v1088 = vadd.f32 %v1086, %v1087
      %v1089 = vlog2.pop %v1088
      %v1090 = vmul.f32 %v1089, 0.6931472
      %v1091 = vadd.f32 %v1078, %v1090
      %v1092 = vmul.f32 %v743, %v1069
      %v1093 = vsel %vm842, %v1092, 0.0
      %v1094 = vrot.slane %v1093, 4
      %v1095 = vadd.f32 %v1093, %v1094
      %v1096 = vrot.slane %v1095, 2
      %v1097 = vadd.f32 %v1095, %v1096
      %v1098 = vrot.slane %v1097, 1
      %v1099 = vadd.f32 %v1097, %v1098
      %v1100 = vsub.f32 %v868, %v879
      %v1101 = vsub.f32 %v1091, %v1099
      %v1102 = vadd.f32 %v1100, %v1101
      %s1103 = smul.u32 %s27, 16
      %v1104 = vlaneseq
      %v1105 = vand.u32 %v1104, 127
      %v1106 = vstv %s1103
      %v1107 = vadd.s32 %v1106, %v1105
      %vm1108 = vcmp.lt.s32.totalorder %v1107, 16
      %v1109 = vsel %vm1108, %v1102, 0.0
      %v1110 = vsel %vm840, %v1109, 0.0
      %1111 = vadd.xlane.f32.xlu0 %v1110
      %v1112 = vpop.xlane.xlu0 %1111
      %vm1113 = vcmask 0
      %1114 = vst.msk [vmem:[%s472] sm:$0x1] %vm1113, %v1112
      %p1115 = scmp.lt.s32.totalorder %s26, 1
      %s1116 = scalar_select %p1115, %s26, 1
      %p1117 = scmp.lt.s32.totalorder %s27, 0
      %s1118 = scalar_select %p1117, %s27, 0
      %s1119 = sadd.s32 %s1118, %s1116
      %s1120 = scalar_lea.vmem %s11, %s1119
      // Predicated region
      $region65: #{tpu_custom_call.1} parent=63 // pred_check
        %p1121 = pneg %p306
      $region66: #{tpu_custom_call.1} parent=63 // pred_check_branch
        %1123 = sbr.rel (%p1121) target = $region68
      $region67: #{tpu_custom_call.1} parent=63 // pred_region
        _
      $region68: #{tpu_custom_call.1} parent=63 // pred_fallthru
        _
    $region64: #{tpu_custom_call.1} parent=5 // pred_fallthru
      _
    %p1124 = scmp.le.s32.totalorder 2, %s17
    // Predicated region
    $region69: #{tpu_custom_call.1} parent=5 // pred_check
      %p1125 = pneg %p1124
    $region70: #{tpu_custom_call.1} parent=5 // pred_check_branch
      %1127 = sbr.rel (%p1125) target = $region72
    $region71: #{tpu_custom_call.1} parent=5 // pred_region
      %s1128 = ssub.s32 %s17, 2
      // Predicated region
      $region73: #{tpu_custom_call.1} parent=71 // pred_check
        %p1129 = pneg %p312
      $region74: #{tpu_custom_call.1} parent=71 // pred_check_branch
        %1131 = sbr.rel (%p1129) target = $region76
      $region75: #{tpu_custom_call.1} parent=71 // pred_region
        %p1132 = scmp.lt.s32.totalorder %s28, 1
        %s1133 = scalar_select %p1132, %s28, 1
        %p1134 = scmp.lt.s32.totalorder %s29, 0
        %s1135 = scalar_select %p1134, %s29, 0
        %s1136 = sadd.s32 %s1135, %s1133
        %s1137 = scalar_lea.vmem %s11, %s1136
      $region76: #{tpu_custom_call.1} parent=71 // pred_fallthru
        _
    $region72: #{tpu_custom_call.1} parent=5 // pred_fallthru
      _
  $region6: #{tpu_custom_call.1} parent=0 // loop_footer
    %s21 = sadd.s32 1, %s17
  $region7: #{tpu_custom_call.1} parent=0 // loop_footer_branch
    %16 = sbr.rel target = $region3
  $region8: #{tpu_custom_call.1} parent=0 // loop_exit
    _

</llo_original>
